<compile_context>
chip_gen: v7x
topology: tpu7x:2x2x1
jax: 0.10.0
libtpu: 0.0.40
codegen_flags: <defaults>
</compile_context>

<pallas_src>
import jax
import jax.numpy as jnp
from jax.experimental import pallas as pl
from jax.experimental.pallas import tpu as pltpu

# ---------------- model hyper-params (shrunk from roberta-base) -------------
VOCAB = 128         # roberta-base: 50265
HIDDEN = 64         # roberta-base: 768
MAX_POS = 64        # roberta-base: 514
PROJ = 128          # self.linear out_features = 128
PAD_ID = 1          # RoBERTa padding_idx
LN_EPS = 1e-5       # roberta-base layer_norm_eps


def _round_up(x, m):
    return ((x + m - 1) // m) * m


def _encoder_kernel(src_ref, pos_ref, we_ref, pe_ref, w_ref, b_ref,
                    inv_len_ref, out_ref):
    """Processes BT batch rows per grid step.

    src_ref:     (BT, S, 1)        int32 token ids
    pos_ref:     (BT, S, 1)        int32 position ids (RoBERTa style)
    we_ref:      (VOCAB, H)        word-embedding table (VMEM resident)
    pe_ref:      (MAX_POS, H)      position (+token-type) table (VMEM resident)
    w_ref:       (H, PROJ)         folded weight  W' = diag(gamma) @ W^T
    b_ref:       (1, PROJ)         folded bias    b' = beta @ W^T + b
    inv_len_ref: (BT, 1)           1 / mask.sum per row (0 for padded rows)
    out_ref:     (BT, PROJ)        pooled output
    """
    bt, s, _ = src_ref.shape
    vocab, h = we_ref.shape
    max_pos = pe_ref.shape[0]
    n = bt * s

    # ---- in-kernel gather: one-hot(ids) @ table on the MXU ------------------
    # (BT, S, 1) -> (N, 1) is a pure leading-dim collapse (layout friendly).
    ids = src_ref[...].reshape(n, 1)
    pids = pos_ref[...].reshape(n, 1)

    iota_v = jax.lax.broadcasted_iota(jnp.int32, (n, vocab), 1)
    iota_p = jax.lax.broadcasted_iota(jnp.int32, (n, max_pos), 1)
    onehot_w = (ids == iota_v).astype(jnp.float32)          # (N, VOCAB)
    onehot_p = (pids == iota_p).astype(jnp.float32)         # (N, MAX_POS)

    x = (jnp.dot(onehot_w, we_ref[...], preferred_element_type=jnp.float32)
         + jnp.dot(onehot_p, pe_ref[...], preferred_element_type=jnp.float32))
    # x: (N, H) f32 == word_emb[ids] + pos_emb[pos_ids] + type_emb[0]

    # ---- LayerNorm statistics via MXU ones-dot (H=64 -> half-empty vregs
    # make VPU/XLU lane reductions 2x the work per byte; MXU is idle). --------
    ones_h = jnp.ones((h, 1), jnp.float32)
    sum_x = jnp.dot(x, ones_h, preferred_element_type=jnp.float32)        # (N,1)
    sum_xx = jnp.dot(x * x, ones_h, preferred_element_type=jnp.float32)   # (N,1)
    inv_h = jnp.float32(1.0 / h)
    mu = sum_x * inv_h
    var = sum_xx * inv_h - mu * mu
    inv_std = jax.lax.rsqrt(var + LN_EPS)                                 # (N,1)

    xn = (x - mu) * inv_std                                               # (N, H)

    # ---- sum over the sequence BEFORE the projection -------------------------
    #   sum_s ((xn_s*gamma + beta) @ W + b)  ==  (sum_s xn_s) @ W' + S * b'
    xn_sum = jnp.sum(xn.reshape(bt, s, h), axis=1)                        # (BT, H)
    pooled = jnp.dot(xn_sum, w_ref[...],
                     preferred_element_type=jnp.float32)                  # (BT, PROJ)
    pooled = pooled + jnp.float32(s) * b_ref[...]

    # Divide by mask length (pads intentionally included in the sum, matching
    # the reference z.sum(dim=1) / mask.sum(dim=1)).
    out_ref[...] = pooled * inv_len_ref[...]


def roberta_encoder_forward(src, seq_tokens_mask, params):
    """Glue (position ids, LN-affine fold) + the Pallas hot-path kernel.

    src:             (B, S) int32 token ids
    seq_tokens_mask: (B, S) float mask (1 = real token)
    """
    B, S = src.shape

    # ---- batch tile: multiple of 8 sublanes, sized against a VMEM working-set
    # model (one-hot matmul operands + LN temporaries, all f32, plus the tiny
    # double-buffered id streams). Independent of which generation we run on
    # because the per-step footprint is now a few KiB per row.
    per_row_bytes = 4 * S * (VOCAB + MAX_POS + 4 * HIDDEN) + 2 * 2 * S * 4
    work_budget = 8 * 1024 * 1024
    bt_cap = max(8, (work_budget // per_row_bytes) // 8 * 8)
    BT = int(min(bt_cap, 512, _round_up(B, 8)))
    # keep >= 2 grid steps when the batch allows it (v7x has 2 TCs; a 1-step
    # grid also gives the BlockSpec pipeline nothing to overlap).
    if B > 8 and _round_up(B, BT) // BT < 2:
        BT = int(_round_up((B + 1) // 2, 8))
    B_pad = _round_up(B, BT)

    if B_pad != B:
        src = jnp.pad(src, ((0, B_pad - B), (0, 0)), constant_values=PAD_ID)
        seq_tokens_mask = jnp.pad(seq_tokens_mask, ((0, B_pad - B), (0, 0)))

    # ---- RoBERTa-style position ids (glue, tiny int32 work) -----------------
    not_pad = (src != PAD_ID).astype(jnp.int32)
    position_ids = jnp.cumsum(not_pad, axis=1) * not_pad + PAD_ID   # (B_pad, S)

    # ids passed as (B, S, 1) so the in-kernel collapse to (N, 1) is layout-free
    src3 = src.astype(jnp.int32)[:, :, None]
    pos3 = position_ids.astype(jnp.int32)[:, :, None]

    # token_type_ids are all zero -> fold type_emb[0] into the position table.
    pos_plus_type = (params["pos_emb"]
                     + params["type_emb"][0][None, :]).astype(jnp.float32)
    word_tbl = params["word_emb"].astype(jnp.float32)

    # ---- fold the LayerNorm affine into the projection -----------------------
    w_t = params["lin_w"].T.astype(jnp.float32)                      # (H, PROJ)
    w_fold = params["ln_gamma"][:, None] * w_t                       # (H, PROJ)
    b_fold = (params["ln_beta"] @ w_t + params["lin_b"]).reshape(1, PROJ)

    lens = jnp.sum(seq_tokens_mask.astype(jnp.float32), axis=1, keepdims=True)
    # clamp so padded (or degenerate fully-masked) rows give 0, not inf/NaN
    inv_len = jnp.where(lens > 0, 1.0 / jnp.maximum(lens, 1.0), 0.0)  # (B_pad,1)

    # explicit scoped-VMEM limit: 32 MiB is safe on every generation
    # (v5e/v6e 128 MiB physical, v7x 64 MiB physical) and well above the
    # actual footprint; v5e's 16 MiB default would otherwise gate BT.
    try:
        phys_vmem = pltpu.get_tpu_info().vmem_capacity_bytes
    except Exception:
        phys_vmem = 64 * 1024 * 1024
    vmem_limit = int(min(phys_vmem // 2, 32 * 1024 * 1024))

    out = pl.pallas_call(
        _encoder_kernel,
        out_shape=jax.ShapeDtypeStruct((B_pad, PROJ), jnp.float32),
        grid_spec=pltpu.PrefetchScalarGridSpec(
            num_scalar_prefetch=0,
            grid=(B_pad // BT,),
            in_specs=[
                pl.BlockSpec((BT, S, 1), lambda b: (b, 0, 0)),        # token ids
                pl.BlockSpec((BT, S, 1), lambda b: (b, 0, 0)),        # position ids
                pl.BlockSpec((VOCAB, HIDDEN), lambda b: (0, 0)),      # word table
                pl.BlockSpec((MAX_POS, HIDDEN), lambda b: (0, 0)),    # pos+type table
                pl.BlockSpec((HIDDEN, PROJ), lambda b: (0, 0)),       # W'
                pl.BlockSpec((1, PROJ), lambda b: (0, 0)),            # b'
                pl.BlockSpec((BT, 1), lambda b: (b, 0)),              # 1/len
            ],
            out_specs=pl.BlockSpec((BT, PROJ), lambda b: (b, 0)),
        ),
        compiler_params=pltpu.CompilerParams(
            dimension_semantics=("parallel",),
            vmem_limit_bytes=vmem_limit),
    )(src3, pos3, word_tbl, pos_plus_type, w_fold, b_fold, inv_len)
    return out[:B]


def init_params(key):
    """Deterministic synthetic parameters (shapes mirror the torch module)."""
    k = jax.random.split(key, 8)
    params = {
        # embedding tables
        "word_emb": jax.random.normal(k[0], (VOCAB, HIDDEN), jnp.float32) * 0.02,
        "pos_emb": jax.random.normal(k[1], (MAX_POS, HIDDEN), jnp.float32) * 0.02,
        "type_emb": jax.random.normal(k[2], (1, HIDDEN), jnp.float32) * 0.02,
        # embedding LayerNorm (non-trivial gamma/beta to exercise the fold)
        "ln_gamma": 1.0 + 0.1 * jax.random.normal(k[5], (HIDDEN,), jnp.float32),
        "ln_beta": 0.02 * jax.random.normal(k[6], (HIDDEN,), jnp.float32),
        # self.linear: weight.uniform_(-0.1, 0.1), default torch bias init
        "lin_w": jax.random.uniform(k[3], (PROJ, HIDDEN), jnp.float32,
                                    minval=-0.1, maxval=0.1),
        "lin_b": jax.random.uniform(k[4], (PROJ,), jnp.float32,
                                    minval=-1.0 / (HIDDEN ** 0.5),
                                    maxval=1.0 / (HIDDEN ** 0.5)),
    }
    return params


def _reference(src, mask, params):
    """Pure-JAX reference for a sanity check (unfused / per-position)."""
    not_pad = (src != PAD_ID).astype(jnp.int32)
    pos_ids = jnp.cumsum(not_pad, axis=1) * not_pad + PAD_ID
    e = (jnp.take(params["word_emb"], src, axis=0)
         + jnp.take(params["pos_emb"], pos_ids, axis=0)
         + params["type_emb"][0][None, None, :])
    mu = e.mean(-1, keepdims=True)
    var = ((e - mu) ** 2).mean(-1, keepdims=True)
    y = (e - mu) / jnp.sqrt(var + LN_EPS) * params["ln_gamma"] + params["ln_beta"]
    z = y @ params["lin_w"].T + params["lin_b"]
    return z.sum(axis=1) / mask.sum(axis=1, keepdims=True)


if __name__ == "__main__":
    key = jax.random.PRNGKey(0)
    kp, ks = jax.random.split(key)
    params = init_params(kp)

    B, S = 2, 8
    src = jax.random.randint(ks, (B, S), 2, VOCAB, dtype=jnp.int32)
    # pad the tails: batch 0 has 6 real tokens, batch 1 has 4
    src = src.at[0, 6:].set(PAD_ID).at[1, 4:].set(PAD_ID)
    seq_tokens_mask = (src != PAD_ID).astype(jnp.float32)

    out = roberta_encoder_forward(src, seq_tokens_mask, params)
    out = jax.block_until_ready(out)

    ref = _reference(src, seq_tokens_mask, params)
    assert out.shape == (B, PROJ)
    assert jnp.allclose(out, ref, atol=5e-4, rtol=5e-4), (
        float(jnp.max(jnp.abs(out - ref))))

    print("KERNEL_OK")
</pallas_src>

<mosaic_0001>
module attributes {stable_mosaic.version = 11 : i64} {
  func.func @_encoder_kernel(%arg0: i32, %arg1: memref<8x8x1xi32, #tpu.memory_space<vmem>>, %arg2: memref<8x8x1xi32, #tpu.memory_space<vmem>>, %arg3: memref<128x64xf32, #tpu.memory_space<vmem>>, %arg4: memref<64x64xf32, #tpu.memory_space<vmem>>, %arg5: memref<64x128xf32, #tpu.memory_space<vmem>>, %arg6: memref<1x128xf32, #tpu.memory_space<vmem>>, %arg7: memref<8x1xf32, #tpu.memory_space<vmem>>, %arg8: memref<8x128xf32, #tpu.memory_space<vmem>>) attributes {dimension_semantics = [#tpu.dimension_semantics<parallel>], iteration_bounds = array<i64: 1>, scalar_prefetch = 0 : i64, scratch_operands = 0 : i64, tpu.core_type = #tpu.core_type<tc>, window_params = [{transform_indices = @transform_0, window_bounds = array<i64: 8, 8, 1>}, {transform_indices = @transform_1, window_bounds = array<i64: 8, 8, 1>}, {pipeline_mode = #tpu.pipeline_mode<synchronous>, transform_indices = @transform_2, window_bounds = array<i64: 128, 64>}, {pipeline_mode = #tpu.pipeline_mode<synchronous>, transform_indices = @transform_3, window_bounds = array<i64: 64, 64>}, {pipeline_mode = #tpu.pipeline_mode<synchronous>, transform_indices = @transform_4, window_bounds = array<i64: 64, 128>}, {pipeline_mode = #tpu.pipeline_mode<synchronous>, transform_indices = @transform_5, window_bounds = array<i64: 1, 128>}, {transform_indices = @transform_6, window_bounds = array<i64: 8, 1>}, {transform_indices = @transform_7, window_bounds = array<i64: 8, 128>}]} {
    %c0 = arith.constant 0 : index
    %c0_0 = arith.constant 0 : index
    %c0_1 = arith.constant 0 : index
    %0 = vector.load %arg1[%c0, %c0_0, %c0_1] : memref<8x8x1xi32, #tpu.memory_space<vmem>>, vector<8x8x1xi32>
    %1 = vector.shape_cast %0 : vector<8x8x1xi32> to vector<64x1xi32>
    %c0_2 = arith.constant 0 : index
    %c0_3 = arith.constant 0 : index
    %c0_4 = arith.constant 0 : index
    %2 = vector.load %arg2[%c0_2, %c0_3, %c0_4] : memref<8x8x1xi32, #tpu.memory_space<vmem>>, vector<8x8x1xi32>
    %3 = vector.shape_cast %2 : vector<8x8x1xi32> to vector<64x1xi32>
    %4 = tpu.iota {dimensions = array<i32: 1>} : vector<64x128xi32>
    %5 = tpu.iota {dimensions = array<i32: 1>} : vector<64x64xi32>
    %6 = vector.broadcast %1 : vector<64x1xi32> to vector<64x128xi32>
    %7 = arith.cmpi eq, %6, %4 : vector<64x128xi32>
    %8 = arith.extui %7 : vector<64x128xi1> to vector<64x128xi32>
    %9 = arith.sitofp %8 : vector<64x128xi32> to vector<64x128xf32>
    %10 = vector.broadcast %3 : vector<64x1xi32> to vector<64x64xi32>
    %11 = arith.cmpi eq, %10, %5 : vector<64x64xi32>
    %12 = arith.extui %11 : vector<64x64xi1> to vector<64x64xi32>
    %13 = arith.sitofp %12 : vector<64x64xi32> to vector<64x64xf32>
    %c0_5 = arith.constant 0 : index
    %c0_6 = arith.constant 0 : index
    %14 = vector.load %arg3[%c0_5, %c0_6] : memref<128x64xf32, #tpu.memory_space<vmem>>, vector<128x64xf32>
    %cst = arith.constant dense<0.000000e+00> : vector<64x64xf32>
    %15 = tpu.matmul %9, %14, %cst {dimension_numbers = #tpu.dot_dimension_numbers<[1], [0], [0], [1], [0, 0, 1, 1], [], []>} : vector<64x128xf32>, vector<128x64xf32>, vector<64x64xf32> -> vector<64x64xf32>
    %c0_7 = arith.constant 0 : index
    %c0_8 = arith.constant 0 : index
    %16 = vector.load %arg4[%c0_7, %c0_8] : memref<64x64xf32, #tpu.memory_space<vmem>>, vector<64x64xf32>
    %cst_9 = arith.constant dense<0.000000e+00> : vector<64x64xf32>
    %17 = tpu.matmul %13, %16, %cst_9 {dimension_numbers = #tpu.dot_dimension_numbers<[1], [0], [0], [1], [0, 0, 1, 1], [], []>} : vector<64x64xf32>, vector<64x64xf32>, vector<64x64xf32> -> vector<64x64xf32>
    %18 = arith.addf %15, %17 : vector<64x64xf32>
    %cst_10 = arith.constant 1.000000e+00 : f32
    %19 = vector.broadcast %cst_10 : f32 to vector<64x1xf32>
    %cst_11 = arith.constant dense<0.000000e+00> : vector<64x1xf32>
    %20 = tpu.matmul %18, %19, %cst_11 {dimension_numbers = #tpu.dot_dimension_numbers<[1], [0], [0], [1], [0, 0, 1, 1], [], []>} : vector<64x64xf32>, vector<64x1xf32>, vector<64x1xf32> -> vector<64x1xf32>
    %21 = arith.mulf %18, %18 : vector<64x64xf32>
    %cst_12 = arith.constant dense<0.000000e+00> : vector<64x1xf32>
    %22 = tpu.matmul %21, %19, %cst_12 {dimension_numbers = #tpu.dot_dimension_numbers<[1], [0], [0], [1], [0, 0, 1, 1], [], []>} : vector<64x64xf32>, vector<64x1xf32>, vector<64x1xf32> -> vector<64x1xf32>
    %cst_13 = arith.constant 1.562500e-02 : f32
    %23 = vector.broadcast %cst_13 : f32 to vector<64x1xf32>
    %24 = arith.mulf %20, %23 : vector<64x1xf32>
    %cst_14 = arith.constant 1.562500e-02 : f32
    %25 = vector.broadcast %cst_14 : f32 to vector<64x1xf32>
    %26 = arith.mulf %22, %25 : vector<64x1xf32>
    %27 = arith.mulf %24, %24 : vector<64x1xf32>
    %28 = arith.subf %26, %27 : vector<64x1xf32>
    %cst_15 = arith.constant 9.99999974E-6 : f32
    %29 = vector.broadcast %cst_15 : f32 to vector<64x1xf32>
    %30 = arith.addf %28, %29 : vector<64x1xf32>
    %31 = math.rsqrt %30 : vector<64x1xf32>
    %32 = vector.broadcast %24 : vector<64x1xf32> to vector<64x64xf32>
    %33 = arith.subf %18, %32 : vector<64x64xf32>
    %34 = vector.broadcast %31 : vector<64x1xf32> to vector<64x64xf32>
    %35 = arith.mulf %33, %34 : vector<64x64xf32>
    %36 = vector.shape_cast %35 : vector<64x64xf32> to vector<8x8x64xf32>
    %cst_16 = arith.constant dense<0.000000e+00> : vector<8x64xf32>
    %37 = vector.multi_reduction <add>, %36, %cst_16 [1] : vector<8x8x64xf32> to vector<8x64xf32>
    %c0_17 = arith.constant 0 : index
    %c0_18 = arith.constant 0 : index
    %38 = vector.load %arg5[%c0_17, %c0_18] : memref<64x128xf32, #tpu.memory_space<vmem>>, vector<64x128xf32>
    %cst_19 = arith.constant dense<0.000000e+00> : vector<8x128xf32>
    %39 = tpu.matmul %37, %38, %cst_19 {dimension_numbers = #tpu.dot_dimension_numbers<[1], [0], [0], [1], [0, 0, 1, 1], [], []>} : vector<8x64xf32>, vector<64x128xf32>, vector<8x128xf32> -> vector<8x128xf32>
    %c0_20 = arith.constant 0 : index
    %c0_21 = arith.constant 0 : index
    %40 = vector.load %arg6[%c0_20, %c0_21] : memref<1x128xf32, #tpu.memory_space<vmem>>, vector<1x128xf32>
    %cst_22 = arith.constant 8.000000e+00 : f32
    %41 = vector.broadcast %cst_22 : f32 to vector<1x128xf32>
    %42 = arith.mulf %41, %40 : vector<1x128xf32>
    %43 = vector.broadcast %42 : vector<1x128xf32> to vector<8x128xf32>
    %44 = arith.addf %39, %43 : vector<8x128xf32>
    %c0_23 = arith.constant 0 : index
    %c0_24 = arith.constant 0 : index
    %45 = vector.load %arg7[%c0_23, %c0_24] : memref<8x1xf32, #tpu.memory_space<vmem>>, vector<8x1xf32>
    %46 = vector.broadcast %45 : vector<8x1xf32> to vector<8x128xf32>
    %47 = arith.mulf %44, %46 : vector<8x128xf32>
    %c0_25 = arith.constant 0 : index
    %c0_26 = arith.constant 0 : index
    %48 = vector.load %arg8[%c0_25, %c0_26] : memref<8x128xf32, #tpu.memory_space<vmem>>, vector<8x128xf32>
    tpu.vector_store %arg8[%c0_25, %c0_26], %47 {strides = array<i32>} : memref<8x128xf32, #tpu.memory_space<vmem>>, vector<8x128xf32>,
    return
  }
  func.func @transform_0(%arg0: i32) -> (i32, i32, i32) {
    %c0_i32 = arith.constant 0 : i32
    %c0_i32_0 = arith.constant 0 : i32
    %c0_i32_1 = arith.constant 0 : i32
    return %arg0, %c0_i32, %c0_i32_0 : i32, i32, i32
  }
  func.func @transform_1(%arg0: i32) -> (i32, i32, i32) {
    %c0_i32 = arith.constant 0 : i32
    %c0_i32_0 = arith.constant 0 : i32
    %c0_i32_1 = arith.constant 0 : i32
    return %arg0, %c0_i32, %c0_i32_0 : i32, i32, i32
  }
  func.func @transform_2(%arg0: i32) -> (i32, i32) {
    %c0_i32 = arith.constant 0 : i32
    %c0_i32_0 = arith.constant 0 : i32
    %c0_i32_1 = arith.constant 0 : i32
    return %c0_i32, %c0_i32_0 : i32, i32
  }
  func.func @transform_3(%arg0: i32) -> (i32, i32) {
    %c0_i32 = arith.constant 0 : i32
    %c0_i32_0 = arith.constant 0 : i32
    %c0_i32_1 = arith.constant 0 : i32
    return %c0_i32, %c0_i32_0 : i32, i32
  }
  func.func @transform_4(%arg0: i32) -> (i32, i32) {
    %c0_i32 = arith.constant 0 : i32
    %c0_i32_0 = arith.constant 0 : i32
    %c0_i32_1 = arith.constant 0 : i32
    return %c0_i32, %c0_i32_0 : i32, i32
  }
  func.func @transform_5(%arg0: i32) -> (i32, i32) {
    %c0_i32 = arith.constant 0 : i32
    %c0_i32_0 = arith.constant 0 : i32
    %c0_i32_1 = arith.constant 0 : i32
    return %c0_i32, %c0_i32_0 : i32, i32
  }
  func.func @transform_6(%arg0: i32) -> (i32, i32) {
    %c0_i32 = arith.constant 0 : i32
    %c0_i32_0 = arith.constant 0 : i32
    return %arg0, %c0_i32 : i32, i32
  }
  func.func @transform_7(%arg0: i32) -> (i32, i32) {
    %c0_i32 = arith.constant 0 : i32
    %c0_i32_0 = arith.constant 0 : i32
    return %arg0, %c0_i32 : i32, i32
  }
}

</mosaic_0001>

<llo_original>
// kernel: tpu_custom_call.1
$region0: #{tpu_custom_call.1}
  #allocation0 [shape = 'u32[]', space=smem, size = 0x4, offset = 0x4, fixed_abs, tag = 'smem constant byte address 0x4 - core index']
  #allocation1 [shape = 'u32[144,128]{1,0:T(1,128)}', space=vmem, size = 0x12000, scoped, tag = 'internal scratch']
  %s0 = inlined_call_operand.vmem [shape: s32[8,8,1], index: 0, kind: input, shape index: {}]
  %s1 = inlined_call_operand.vmem [shape: s32[8,8,1], index: 1, kind: input, shape index: {}]
  %s2 = inlined_call_operand.vmem [shape: f32[128,64], index: 2, kind: input, shape index: {}]
  %s3 = inlined_call_operand.vmem [shape: f32[64,64], index: 3, kind: input, shape index: {}]
  %s4 = inlined_call_operand.vmem [shape: f32[64,128], index: 4, kind: input, shape index: {}]
  %s5 = inlined_call_operand.vmem [shape: f32[1,128], index: 5, kind: input, shape index: {}]
  %s6 = inlined_call_operand.vmem [shape: f32[8,1], index: 6, kind: input, shape index: {}]
  %s7 = inlined_call_operand.hbm [shape: f32[8,128], index: 7, kind: output, shape index: {}]
  %s8 = sld [smem:[#allocation0]]
  $region38: #{tpu_custom_call.1} parent=0
    _
  %s10 = ssub.s32 1, %s8
  %s11 = scalar_select 0, %s10, %s8
  $region1: #{tpu_custom_call.1} parent=0
    #allocation2 [shape = 'u8[4096]{0}', space=vmem, size = 0x1000, scoped, tag = 'output window, operand 0, single buffered']
    #allocation3 [shape = 's32[1]{0}', space=sflag, size = 0x4, scoped, tag = 'scoped memory for tpu_custom_call.1']
    %12 = vsyncpa [#allocation3], 0
    // Predicated region
    $region2: #{tpu_custom_call.1} parent=1 // pred_check
      _
    $region3: #{tpu_custom_call.1} parent=1 // pred_check_branch
      %14 = sbr.rel (0) target = $region5
    $region4: #{tpu_custom_call.1} parent=1 // pred_region
      _
    $region5: #{tpu_custom_call.1} parent=1 // pred_fallthru
      _
    // Predicated region
    $region6: #{tpu_custom_call.1} parent=1 // pred_check
      _
    $region7: #{tpu_custom_call.1} parent=1 // pred_check_branch
      %16 = sbr.rel (0) target = $region9
    $region8: #{tpu_custom_call.1} parent=1 // pred_region
      _
    $region9: #{tpu_custom_call.1} parent=1 // pred_fallthru
      _
    // Predicated region
    $region10: #{tpu_custom_call.1} parent=1 // pred_check
      _
    $region11: #{tpu_custom_call.1} parent=1 // pred_check_branch
      %18 = sbr.rel (0) target = $region13
    $region12: #{tpu_custom_call.1} parent=1 // pred_region
      _
    $region13: #{tpu_custom_call.1} parent=1 // pred_fallthru
      _
    // Predicated region
    $region14: #{tpu_custom_call.1} parent=1 // pred_check
      _
    $region15: #{tpu_custom_call.1} parent=1 // pred_check_branch
      %20 = sbr.rel (0) target = $region17
    $region16: #{tpu_custom_call.1} parent=1 // pred_region
      _
    $region17: #{tpu_custom_call.1} parent=1 // pred_fallthru
      _
    // Predicated region
    $region18: #{tpu_custom_call.1} parent=1 // pred_check
      _
    $region19: #{tpu_custom_call.1} parent=1 // pred_check_branch
      %22 = sbr.rel (0) target = $region21
    $region20: #{tpu_custom_call.1} parent=1 // pred_region
      _
    $region21: #{tpu_custom_call.1} parent=1 // pred_fallthru
      _
    // Predicated region
    $region22: #{tpu_custom_call.1} parent=1 // pred_check
      _
    $region23: #{tpu_custom_call.1} parent=1 // pred_check_branch
      %24 = sbr.rel (0) target = $region25
    $region24: #{tpu_custom_call.1} parent=1 // pred_region
      _
    $region25: #{tpu_custom_call.1} parent=1 // pred_fallthru
      _
    // Predicated region
    $region26: #{tpu_custom_call.1} parent=1 // pred_check
      _
    $region27: #{tpu_custom_call.1} parent=1 // pred_check_branch
      %26 = sbr.rel (0) target = $region29
    $region28: #{tpu_custom_call.1} parent=1 // pred_region
      _
    $region29: #{tpu_custom_call.1} parent=1 // pred_fallthru
      _
    %v27 = vld [vmem:[%s0] sm:$0xff]
    %v28 = vld [vmem:[%s0 + $0x8] sm:$0xff]
    %v29 = vld [vmem:[%s0 + $0x10] sm:$0xff]
    %v30 = vld [vmem:[%s0 + $0x18] sm:$0xff]
    %v31 = vld [vmem:[%s0 + $0x20] sm:$0xff]
    %v32 = vld [vmem:[%s0 + $0x28] sm:$0xff]
    %v33 = vld [vmem:[%s0 + $0x30] sm:$0xff]
    %v34 = vld [vmem:[%s0 + $0x38] sm:$0xff]
    %v35 = vld [vmem:[%s1] sm:$0xff]
    %v36 = vld [vmem:[%s1 + $0x8] sm:$0xff]
    %v37 = vld [vmem:[%s1 + $0x10] sm:$0xff]
    %v38 = vld [vmem:[%s1 + $0x18] sm:$0xff]
    %v39 = vld [vmem:[%s1 + $0x20] sm:$0xff]
    %v40 = vld [vmem:[%s1 + $0x28] sm:$0xff]
    %v41 = vld [vmem:[%s1 + $0x30] sm:$0xff]
    %v42 = vld [vmem:[%s1 + $0x38] sm:$0xff]
    %v43 = vlaneseq
    %v44 = vand.u32 %v43, 127
    %45 = vset.pattern.permute.xlu0 0
    %46 = vperm.xlu0 %45, %v27
    %v47 = vpop.permute.xlu0 %46
    %48 = vset.pattern.permute.xlu0 0
    %49 = vperm.xlu0 %48, %v28
    %v50 = vpop.permute.xlu0 %49
    %51 = vset.pattern.permute.xlu0 0
    %52 = vperm.xlu0 %51, %v29
    %v53 = vpop.permute.xlu0 %52
    %54 = vset.pattern.permute.xlu0 0
    %55 = vperm.xlu0 %54, %v30
    %v56 = vpop.permute.xlu0 %55
    %57 = vset.pattern.permute.xlu0 0
    %58 = vperm.xlu0 %57, %v31
    %v59 = vpop.permute.xlu0 %58
    %60 = vset.pattern.permute.xlu0 0
    %61 = vperm.xlu0 %60, %v32
    %v62 = vpop.permute.xlu0 %61
    %63 = vset.pattern.permute.xlu0 0
    %64 = vperm.xlu0 %63, %v33
    %v65 = vpop.permute.xlu0 %64
    %66 = vset.pattern.permute.xlu0 0
    %67 = vperm.xlu0 %66, %v34
    %v68 = vpop.permute.xlu0 %67
    %vm69 = vcmp.eq.s32.totalorder %v47, %v44
    %vm70 = vcmp.eq.s32.totalorder %v50, %v44
    %vm71 = vcmp.eq.s32.totalorder %v53, %v44
    %vm72 = vcmp.eq.s32.totalorder %v56, %v44
    %vm73 = vcmp.eq.s32.totalorder %v59, %v44
    %vm74 = vcmp.eq.s32.totalorder %v62, %v44
    %vm75 = vcmp.eq.s32.totalorder %v65, %v44
    %vm76 = vcmp.eq.s32.totalorder %v68, %v44
    %v77 = vsel %vm69, 1, 0
    %v78 = vsel %vm70, 1, 0
    %v79 = vsel %vm71, 1, 0
    %v80 = vsel %vm72, 1, 0
    %v81 = vsel %vm73, 1, 0
    %v82 = vsel %vm74, 1, 0
    %v83 = vsel %vm75, 1, 0
    %v84 = vsel %vm76, 1, 0
    %v85 = vcvt.s32.f32 %v77
    %v86 = vcvt.s32.f32 %v78
    %v87 = vcvt.s32.f32 %v79
    %v88 = vcvt.s32.f32 %v80
    %v89 = vcvt.s32.f32 %v81
    %v90 = vcvt.s32.f32 %v82
    %v91 = vcvt.s32.f32 %v83
    %v92 = vcvt.s32.f32 %v84
    %93 = vset.pattern.permute.xlu0 0
    %94 = vperm.xlu0 %93, %v35
    %v95 = vpop.permute.xlu0 %94
    %96 = vset.pattern.permute.xlu0 0
    %97 = vperm.xlu0 %96, %v36
    %v98 = vpop.permute.xlu0 %97
    %99 = vset.pattern.permute.xlu0 0
    %100 = vperm.xlu0 %99, %v37
    %v101 = vpop.permute.xlu0 %100
    %102 = vset.pattern.permute.xlu0 0
    %103 = vperm.xlu0 %102, %v38
    %v104 = vpop.permute.xlu0 %103
    %105 = vset.pattern.permute.xlu0 0
    %106 = vperm.xlu0 %105, %v39
    %v107 = vpop.permute.xlu0 %106
    %108 = vset.pattern.permute.xlu0 0
    %109 = vperm.xlu0 %108, %v40
    %v110 = vpop.permute.xlu0 %109
    %111 = vset.pattern.permute.xlu0 0
    %112 = vperm.xlu0 %111, %v41
    %v113 = vpop.permute.xlu0 %112
    %114 = vset.pattern.permute.xlu0 0
    %115 = vperm.xlu0 %114, %v42
    %v116 = vpop.permute.xlu0 %115
    %vm117 = vcmp.eq.s32.totalorder %v95, %v44
    %vm118 = vcmp.eq.s32.totalorder %v98, %v44
    %vm119 = vcmp.eq.s32.totalorder %v101, %v44
    %vm120 = vcmp.eq.s32.totalorder %v104, %v44
    %vm121 = vcmp.eq.s32.totalorder %v107, %v44
    %vm122 = vcmp.eq.s32.totalorder %v110, %v44
    %vm123 = vcmp.eq.s32.totalorder %v113, %v44
    %vm124 = vcmp.eq.s32.totalorder %v116, %v44
    %v125 = vsel %vm117, 1, 0
    %v126 = vsel %vm118, 1, 0
    %v127 = vsel %vm119, 1, 0
    %v128 = vsel %vm120, 1, 0
    %v129 = vsel %vm121, 1, 0
    %v130 = vsel %vm122, 1, 0
    %v131 = vsel %vm123, 1, 0
    %v132 = vsel %vm124, 1, 0
    %v133 = vcvt.s32.f32 %v125
    %v134 = vcvt.s32.f32 %v126
    %v135 = vcvt.s32.f32 %v127
    %v136 = vcvt.s32.f32 %v128
    %v137 = vcvt.s32.f32 %v129
    %v138 = vcvt.s32.f32 %v130
    %v139 = vcvt.s32.f32 %v131
    %v140 = vcvt.s32.f32 %v132
    %v141 = vld [vmem:[%s2] sm:$0xff]
    %v142 = vld [vmem:[%s2 + $0x8] sm:$0xff]
    %v143 = vld [vmem:[%s2 + $0x10] sm:$0xff]
    %v144 = vld [vmem:[%s2 + $0x18] sm:$0xff]
    %v145 = vld [vmem:[%s2 + $0x20] sm:$0xff]
    %v146 = vld [vmem:[%s2 + $0x28] sm:$0xff]
    %v147 = vld [vmem:[%s2 + $0x30] sm:$0xff]
    %v148 = vld [vmem:[%s2 + $0x38] sm:$0xff]
    %v149 = vld [vmem:[%s2 + $0x40] sm:$0xff]
    %v150 = vld [vmem:[%s2 + $0x48] sm:$0xff]
    %v151 = vld [vmem:[%s2 + $0x50] sm:$0xff]
    %v152 = vld [vmem:[%s2 + $0x58] sm:$0xff]
    %v153 = vld [vmem:[%s2 + $0x60] sm:$0xff]
    %v154 = vld [vmem:[%s2 + $0x68] sm:$0xff]
    %v155 = vld [vmem:[%s2 + $0x70] sm:$0xff]
    %v156 = vld [vmem:[%s2 + $0x78] sm:$0xff]
    %v157 = vld [vmem:[%s3] sm:$0xff]
    %v158 = vld [vmem:[%s3 + $0x8] sm:$0xff]
    %v159 = vld [vmem:[%s3 + $0x10] sm:$0xff]
    %v160 = vld [vmem:[%s3 + $0x18] sm:$0xff]
    %v161 = vld [vmem:[%s3 + $0x20] sm:$0xff]
    %v162 = vld [vmem:[%s3 + $0x28] sm:$0xff]
    %v163 = vld [vmem:[%s3 + $0x30] sm:$0xff]
    %v164 = vld [vmem:[%s3 + $0x38] sm:$0xff]
    %vm165 = vcmask 523264
    %v167 = vsel %vm165, %v133, 0
    %v170 = vsel %vm165, %v134, 0
    %v173 = vsel %vm165, %v135, 0
    %v176 = vsel %vm165, %v136, 0
    %v179 = vsel %vm165, %v137, 0
    %v182 = vsel %vm165, %v138, 0
    %v185 = vsel %vm165, %v139, 0
    %v188 = vsel %vm165, %v140, 0
    %190 = vmatprep.subr.mxu0 0.0
    %191 = vmatpush1.msra.mxu0 %v157
    %192 = vmatprep.subr.mxu0 0.0
    %193 = vmatpush1.msra.mxu0 %v158
    %194 = vmatprep.subr.mxu0 0.0
    %195 = vmatpush1.msra.mxu0 %v159
    %196 = vmatprep.subr.mxu0 0.0
    %197 = vmatpush1.msra.mxu0 %v160
    %198 = vmatprep.subr.mxu0 0.0
    %199 = vmatpush1.msra.mxu0 %v161
    %200 = vmatprep.subr.mxu0 0.0
    %201 = vmatpush1.msra.mxu0 %v162
    %202 = vmatprep.subr.mxu0 0.0
    %203 = vmatpush1.msra.mxu0 %v163
    %204 = vmatprep.subr.mxu0 0.0
    %205 = vmatpush1.msra.mxu0 %v164
    %206 = vmatprep.subr.mxu0 0.0
    %207 = vmatpush1.msra.mxu0 0.0
    %208 = vmatprep.subr.mxu0 0.0
    %209 = vmatpush1.msra.mxu0 0.0
    %210 = vmatprep.subr.mxu0 0.0
    %211 = vmatpush1.msra.mxu0 0.0
    %212 = vmatprep.subr.mxu0 0.0
    %213 = vmatpush1.msra.mxu0 0.0
    %214 = vmatprep.subr.mxu0 0.0
    %215 = vmatpush1.msra.mxu0 0.0
    %216 = vmatprep.subr.mxu0 0.0
    %217 = vmatpush1.msra.mxu0 0.0
    %218 = vmatprep.subr.mxu0 0.0
    %219 = vmatpush1.msra.mxu0 0.0
    %220 = vmatprep.subr.mxu0 0.0
    %221 = vmatpush1.msra.mxu0 0.0
    %222 = vmatprep.subr.mxu0 0.0
    %223 = vmatpush1.msra.mxu0 0.0
    %224 = vmatprep.subr.mxu0 0.0
    %225 = vmatpush1.msra.mxu0 0.0
    %226 = vmatprep.subr.mxu0 0.0
    %227 = vmatpush1.msra.mxu0 0.0
    %228 = vmatprep.subr.mxu0 0.0
    %229 = vmatpush1.msra.mxu0 0.0
    %230 = vmatprep.subr.mxu0 0.0
    %231 = vmatpush1.msra.mxu0 0.0
    %232 = vmatprep.subr.mxu0 0.0
    %233 = vmatpush1.msra.mxu0 0.0
    %234 = vmatprep.subr.mxu0 0.0
    %235 = vmatpush1.msra.mxu0 0.0
    %236 = vmatprep.subr.mxu0 0.0
    %237 = vmatpush1.msra.mxu0 0.0
    %238 = vmatprep.subr.mxu0 0.0
    %239 = vmatpush1.msra.mxu0 0.0
    %240 = vmatprep.subr.mxu0 0.0
    %241 = vmatpush1.msra.mxu0 0.0
    %242 = vmatprep.subr.mxu0 0.0
    %243 = vmatpush1.msra.mxu0 0.0
    %244 = vmatprep.subr.mxu0 0.0
    %245 = vmatpush1.msra.mxu0 0.0
    %246 = vmatprep.subr.mxu0 0.0
    %247 = vmatpush1.msra.mxu0 0.0
    %248 = vmatprep.subr.mxu0 0.0
    %249 = vmatpush1.msra.mxu0 0.0
    %250 = vmatprep.subr.mxu0 0.0
    %251 = vmatpush1.msra.mxu0 0.0
    %252 = vmatprep.subr.mxu0 0.0
    %253 = vmatpush1.msra.mxu0 0.0
    %254 = vmatprep.mubr.f32.mxu0 0.0
    %255 = vmatmul.mubr.f32.gmra.mrb[0].mxu0 %v167
    %v256 = vpop.f32.mrb[0].mxu0
    %v257 = vadd.f32 0.0, %v256
    %v258 = vpop.f32.mrb[0].mxu0
    %259 = vmatprep.mubr.f32.mxu0 0.0
    %260 = vmatmul.mubr.f32.gmra.mrb[0].mxu0 %v170
    %v261 = vpop.f32.mrb[0].mxu0
    %v262 = vadd.f32 0.0, %v261
    %v263 = vpop.f32.mrb[0].mxu0
    %264 = vmatprep.mubr.f32.mxu0 0.0
    %265 = vmatmul.mubr.f32.gmra.mrb[0].mxu0 %v173
    %v266 = vpop.f32.mrb[0].mxu0
    %v267 = vadd.f32 0.0, %v266
    %v268 = vpop.f32.mrb[0].mxu0
    %269 = vmatprep.mubr.f32.mxu0 0.0
    %270 = vmatmul.mubr.f32.gmra.mrb[0].mxu0 %v176
    %v271 = vpop.f32.mrb[0].mxu0
    %v272 = vadd.f32 0.0, %v271
    %v273 = vpop.f32.mrb[0].mxu0
    %274 = vmatprep.mubr.f32.mxu0 0.0
    %275 = vmatmul.mubr.f32.gmra.mrb[0].mxu0 %v179
    %v276 = vpop.f32.mrb[0].mxu0
    %v277 = vadd.f32 0.0, %v276
    %v278 = vpop.f32.mrb[0].mxu0
    %279 = vmatprep.mubr.f32.mxu0 0.0
    %280 = vmatmul.mubr.f32.gmra.mrb[0].mxu0 %v182
    %v281 = vpop.f32.mrb[0].mxu0
    %v282 = vadd.f32 0.0, %v281
    %v283 = vpop.f32.mrb[0].mxu0
    %284 = vmatprep.mubr.f32.mxu0 0.0
    %285 = vmatmul.mubr.f32.gmra.mrb[0].mxu0 %v185
    %v286 = vpop.f32.mrb[0].mxu0
    %v287 = vadd.f32 0.0, %v286
    %v288 = vpop.f32.mrb[0].mxu0
    %289 = vmatprep.mubr.f32.mxu0 0.0
    %290 = vmatmul.mubr.f32.gmra.mrb[0].mxu0 %v188
    %v291 = vpop.f32.mrb[0].mxu0
    %v292 = vadd.f32 0.0, %v291
    %v293 = vpop.f32.mrb[0].mxu0
    %294 = vdwg.mxu0
    %295 = vmatprep.subr.mxu0 0.0
    %296 = vmatpush1.msra.mxu0 %v141
    %297 = vmatprep.subr.mxu0 0.0
    %298 = vmatpush1.msra.mxu0 %v142
    %299 = vmatprep.subr.mxu0 0.0
    %300 = vmatpush1.msra.mxu0 %v143
    %301 = vmatprep.subr.mxu0 0.0
    %302 = vmatpush1.msra.mxu0 %v144
    %303 = vmatprep.subr.mxu0 0.0
    %304 = vmatpush1.msra.mxu0 %v145
    %305 = vmatprep.subr.mxu0 0.0
    %306 = vmatpush1.msra.mxu0 %v146
    %307 = vmatprep.subr.mxu0 0.0
    %308 = vmatpush1.msra.mxu0 %v147
    %309 = vmatprep.subr.mxu0 0.0
    %310 = vmatpush1.msra.mxu0 %v148
    %311 = vmatprep.subr.mxu0 0.0
    %312 = vmatpush1.msra.mxu0 %v149
    %313 = vmatprep.subr.mxu0 0.0
    %314 = vmatpush1.msra.mxu0 %v150
    %315 = vmatprep.subr.mxu0 0.0
    %316 = vmatpush1.msra.mxu0 %v151
    %317 = vmatprep.subr.mxu0 0.0
    %318 = vmatpush1.msra.mxu0 %v152
    %319 = vmatprep.subr.mxu0 0.0
    %320 = vmatpush1.msra.mxu0 %v153
    %321 = vmatprep.subr.mxu0 0.0
    %322 = vmatpush1.msra.mxu0 %v154
    %323 = vmatprep.subr.mxu0 0.0
    %324 = vmatpush1.msra.mxu0 %v155
    %325 = vmatprep.subr.mxu0 0.0
    %326 = vmatpush1.msra.mxu0 %v156
    %327 = vmatprep.subr.mxu0 0.0
    %328 = vmatpush1.msra.mxu0 0.0
    %329 = vmatprep.subr.mxu0 0.0
    %330 = vmatpush1.msra.mxu0 0.0
    %331 = vmatprep.subr.mxu0 0.0
    %332 = vmatpush1.msra.mxu0 0.0
    %333 = vmatprep.subr.mxu0 0.0
    %334 = vmatpush1.msra.mxu0 0.0
    %335 = vmatprep.subr.mxu0 0.0
    %336 = vmatpush1.msra.mxu0 0.0
    %337 = vmatprep.subr.mxu0 0.0
    %338 = vmatpush1.msra.mxu0 0.0
    %339 = vmatprep.subr.mxu0 0.0
    %340 = vmatpush1.msra.mxu0 0.0
    %341 = vmatprep.subr.mxu0 0.0
    %342 = vmatpush1.msra.mxu0 0.0
    %343 = vmatprep.subr.mxu0 0.0
    %344 = vmatpush1.msra.mxu0 0.0
    %345 = vmatprep.subr.mxu0 0.0
    %346 = vmatpush1.msra.mxu0 0.0
    %347 = vmatprep.subr.mxu0 0.0
    %348 = vmatpush1.msra.mxu0 0.0
    %349 = vmatprep.subr.mxu0 0.0
    %350 = vmatpush1.msra.mxu0 0.0
    %351 = vmatprep.subr.mxu0 0.0
    %352 = vmatpush1.msra.mxu0 0.0
    %353 = vmatprep.subr.mxu0 0.0
    %354 = vmatpush1.msra.mxu0 0.0
    %355 = vmatprep.subr.mxu0 0.0
    %356 = vmatpush1.msra.mxu0 0.0
    %357 = vmatprep.subr.mxu0 0.0
    %358 = vmatpush1.msra.mxu0 0.0
    %359 = vmatprep.mubr.f32.mxu0 0.0
    %360 = vmatmul.mubr.f32.gmra.mrb[0].mxu0 %v85
    %v361 = vpop.f32.mrb[0].mxu0
    %v362 = vadd.f32 %v257, %v361
    %v363 = vpop.f32.mrb[0].mxu0
    %364 = vmatprep.mubr.f32.mxu0 0.0
    %365 = vmatmul.mubr.f32.gmra.mrb[0].mxu0 %v86
    %v366 = vpop.f32.mrb[0].mxu0
    %v367 = vadd.f32 %v262, %v366
    %v368 = vpop.f32.mrb[0].mxu0
    %369 = vmatprep.mubr.f32.mxu0 0.0
    %370 = vmatmul.mubr.f32.gmra.mrb[0].mxu0 %v87
    %v371 = vpop.f32.mrb[0].mxu0
    %v372 = vadd.f32 %v267, %v371
    %v373 = vpop.f32.mrb[0].mxu0
    %374 = vmatprep.mubr.f32.mxu0 0.0
    %375 = vmatmul.mubr.f32.gmra.mrb[0].mxu0 %v88
    %v376 = vpop.f32.mrb[0].mxu0
    %v377 = vadd.f32 %v272, %v376
    %v378 = vpop.f32.mrb[0].mxu0
    %379 = vmatprep.mubr.f32.mxu0 0.0
    %380 = vmatmul.mubr.f32.gmra.mrb[0].mxu0 %v89
    %v381 = vpop.f32.mrb[0].mxu0
    %v382 = vadd.f32 %v277, %v381
    %v383 = vpop.f32.mrb[0].mxu0
    %384 = vmatprep.mubr.f32.mxu0 0.0
    %385 = vmatmul.mubr.f32.gmra.mrb[0].mxu0 %v90
    %v386 = vpop.f32.mrb[0].mxu0
    %v387 = vadd.f32 %v282, %v386
    %v388 = vpop.f32.mrb[0].mxu0
    %389 = vmatprep.mubr.f32.mxu0 0.0
    %390 = vmatmul.mubr.f32.gmra.mrb[0].mxu0 %v91
    %v391 = vpop.f32.mrb[0].mxu0
    %v392 = vadd.f32 %v287, %v391
    %v393 = vpop.f32.mrb[0].mxu0
    %394 = vmatprep.mubr.f32.mxu0 0.0
    %395 = vmatmul.mubr.f32.gmra.mrb[0].mxu0 %v92
    %v396 = vpop.f32.mrb[0].mxu0
    %v397 = vadd.f32 %v292, %v396
    %v398 = vpop.f32.mrb[0].mxu0
    %399 = vdwg.mxu0
    %v401 = vsel %vm165, %v362, 0
    %v404 = vsel %vm165, %v367, 0
    %v407 = vsel %vm165, %v372, 0
    %v410 = vsel %vm165, %v377, 0
    %v413 = vsel %vm165, %v382, 0
    %v416 = vsel %vm165, %v387, 0
    %v419 = vsel %vm165, %v392, 0
    %v422 = vsel %vm165, %v397, 0
    %424 = vmatprep.subr.mxu0 0.0
    %425 = vmatpush1.msra.mxu0 1.0
    %426 = vmatprep.subr.mxu0 0.0
    %427 = vmatpush1.msra.mxu0 1.0
    %428 = vmatprep.subr.mxu0 0.0
    %429 = vmatpush1.msra.mxu0 1.0
    %430 = vmatprep.subr.mxu0 0.0
    %431 = vmatpush1.msra.mxu0 1.0
    %432 = vmatprep.subr.mxu0 0.0
    %433 = vmatpush1.msra.mxu0 1.0
    %434 = vmatprep.subr.mxu0 0.0
    %435 = vmatpush1.msra.mxu0 1.0
    %436 = vmatprep.subr.mxu0 0.0
    %437 = vmatpush1.msra.mxu0 1.0
    %438 = vmatprep.subr.mxu0 0.0
    %439 = vmatpush1.msra.mxu0 1.0
    %440 = vmatprep.subr.mxu0 0.0
    %441 = vmatpush1.msra.mxu0 0.0
    %442 = vmatprep.subr.mxu0 0.0
    %443 = vmatpush1.msra.mxu0 0.0
    %444 = vmatprep.subr.mxu0 0.0
    %445 = vmatpush1.msra.mxu0 0.0
    %446 = vmatprep.subr.mxu0 0.0
    %447 = vmatpush1.msra.mxu0 0.0
    %448 = vmatprep.subr.mxu0 0.0
    %449 = vmatpush1.msra.mxu0 0.0
    %450 = vmatprep.subr.mxu0 0.0
    %451 = vmatpush1.msra.mxu0 0.0
    %452 = vmatprep.subr.mxu0 0.0
    %453 = vmatpush1.msra.mxu0 0.0
    %454 = vmatprep.subr.mxu0 0.0
    %455 = vmatpush1.msra.mxu0 0.0
    %456 = vmatprep.subr.mxu0 0.0
    %457 = vmatpush1.msra.mxu0 0.0
    %458 = vmatprep.subr.mxu0 0.0
    %459 = vmatpush1.msra.mxu0 0.0
    %460 = vmatprep.subr.mxu0 0.0
    %461 = vmatpush1.msra.mxu0 0.0
    %462 = vmatprep.subr.mxu0 0.0
    %463 = vmatpush1.msra.mxu0 0.0
    %464 = vmatprep.subr.mxu0 0.0
    %465 = vmatpush1.msra.mxu0 0.0
    %466 = vmatprep.subr.mxu0 0.0
    %467 = vmatpush1.msra.mxu0 0.0
    %468 = vmatprep.subr.mxu0 0.0
    %469 = vmatpush1.msra.mxu0 0.0
    %470 = vmatprep.subr.mxu0 0.0
    %471 = vmatpush1.msra.mxu0 0.0
    %472 = vmatprep.subr.mxu0 0.0
    %473 = vmatpush1.msra.mxu0 0.0
    %474 = vmatprep.subr.mxu0 0.0
    %475 = vmatpush1.msra.mxu0 0.0
    %476 = vmatprep.subr.mxu0 0.0
    %477 = vmatpush1.msra.mxu0 0.0
    %478 = vmatprep.subr.mxu0 0.0
    %479 = vmatpush1.msra.mxu0 0.0
    %480 = vmatprep.subr.mxu0 0.0
    %481 = vmatpush1.msra.mxu0 0.0
    %482 = vmatprep.subr.mxu0 0.0
    %483 = vmatpush1.msra.mxu0 0.0
    %484 = vmatprep.subr.mxu0 0.0
    %485 = vmatpush1.msra.mxu0 0.0
    %486 = vmatprep.subr.mxu0 0.0
    %487 = vmatpush1.msra.mxu0 0.0
    %488 = vmatprep.mubr.f32.mxu0 0.0
    %489 = vmatmul.mubr.f32.gmra.mrb[0].mxu0 %v401
    %v490 = vpop.f32.mrb[0].mxu0
    %v491 = vadd.f32 0.0, %v490
    %v492 = vpop.f32.mrb[0].mxu0
    %493 = vmatprep.mubr.f32.mxu0 0.0
    %494 = vmatmul.mubr.f32.gmra.mrb[0].mxu0 %v404
    %v495 = vpop.f32.mrb[0].mxu0
    %v496 = vadd.f32 0.0, %v495
    %v497 = vpop.f32.mrb[0].mxu0
    %498 = vmatprep.mubr.f32.mxu0 0.0
    %499 = vmatmul.mubr.f32.gmra.mrb[0].mxu0 %v407
    %v500 = vpop.f32.mrb[0].mxu0
    %v501 = vadd.f32 0.0, %v500
    %v502 = vpop.f32.mrb[0].mxu0
    %503 = vmatprep.mubr.f32.mxu0 0.0
    %504 = vmatmul.mubr.f32.gmra.mrb[0].mxu0 %v410
    %v505 = vpop.f32.mrb[0].mxu0
    %v506 = vadd.f32 0.0, %v505
    %v507 = vpop.f32.mrb[0].mxu0
    %508 = vmatprep.mubr.f32.mxu0 0.0
    %509 = vmatmul.mubr.f32.gmra.mrb[0].mxu0 %v413
    %v510 = vpop.f32.mrb[0].mxu0
    %v511 = vadd.f32 0.0, %v510
    %v512 = vpop.f32.mrb[0].mxu0
    %513 = vmatprep.mubr.f32.mxu0 0.0
    %514 = vmatmul.mubr.f32.gmra.mrb[0].mxu0 %v416
    %v515 = vpop.f32.mrb[0].mxu0
    %v516 = vadd.f32 0.0, %v515
    %v517 = vpop.f32.mrb[0].mxu0
    %518 = vmatprep.mubr.f32.mxu0 0.0
    %519 = vmatmul.mubr.f32.gmra.mrb[0].mxu0 %v419
    %v520 = vpop.f32.mrb[0].mxu0
    %v521 = vadd.f32 0.0, %v520
    %v522 = vpop.f32.mrb[0].mxu0
    %523 = vmatprep.mubr.f32.mxu0 0.0
    %524 = vmatmul.mubr.f32.gmra.mrb[0].mxu0 %v422
    %v525 = vpop.f32.mrb[0].mxu0
    %v526 = vadd.f32 0.0, %v525
    %v527 = vpop.f32.mrb[0].mxu0
    %528 = vdwg.mxu0
    %v529 = vmul.f32 %v362, %v362
    %v530 = vmul.f32 %v367, %v367
    %v531 = vmul.f32 %v372, %v372
    %v532 = vmul.f32 %v377, %v377
    %v533 = vmul.f32 %v382, %v382
    %v534 = vmul.f32 %v387, %v387
    %v535 = vmul.f32 %v392, %v392
    %v536 = vmul.f32 %v397, %v397
    %v538 = vsel %vm165, %v529, 0
    %v541 = vsel %vm165, %v530, 0
    %v544 = vsel %vm165, %v531, 0
    %v547 = vsel %vm165, %v532, 0
    %v550 = vsel %vm165, %v533, 0
    %v553 = vsel %vm165, %v534, 0
    %v556 = vsel %vm165, %v535, 0
    %v559 = vsel %vm165, %v536, 0
    %561 = vmatprep.subr.mxu0 0.0
    %562 = vmatpush1.msra.mxu0 1.0
    %563 = vmatprep.subr.mxu0 0.0
    %564 = vmatpush1.msra.mxu0 1.0
    %565 = vmatprep.subr.mxu0 0.0
    %566 = vmatpush1.msra.mxu0 1.0
    %567 = vmatprep.subr.mxu0 0.0
    %568 = vmatpush1.msra.mxu0 1.0
    %569 = vmatprep.subr.mxu0 0.0
    %570 = vmatpush1.msra.mxu0 1.0
    %571 = vmatprep.subr.mxu0 0.0
    %572 = vmatpush1.msra.mxu0 1.0
    %573 = vmatprep.subr.mxu0 0.0
    %574 = vmatpush1.msra.mxu0 1.0
    %575 = vmatprep.subr.mxu0 0.0
    %576 = vmatpush1.msra.mxu0 1.0
    %577 = vmatprep.subr.mxu0 0.0
    %578 = vmatpush1.msra.mxu0 0.0
    %579 = vmatprep.subr.mxu0 0.0
    %580 = vmatpush1.msra.mxu0 0.0
    %581 = vmatprep.subr.mxu0 0.0
    %582 = vmatpush1.msra.mxu0 0.0
    %583 = vmatprep.subr.mxu0 0.0
    %584 = vmatpush1.msra.mxu0 0.0
    %585 = vmatprep.subr.mxu0 0.0
    %586 = vmatpush1.msra.mxu0 0.0
    %587 = vmatprep.subr.mxu0 0.0
    %588 = vmatpush1.msra.mxu0 0.0
    %589 = vmatprep.subr.mxu0 0.0
    %590 = vmatpush1.msra.mxu0 0.0
    %591 = vmatprep.subr.mxu0 0.0
    %592 = vmatpush1.msra.mxu0 0.0
    %593 = vmatprep.subr.mxu0 0.0
    %594 = vmatpush1.msra.mxu0 0.0
    %595 = vmatprep.subr.mxu0 0.0
    %596 = vmatpush1.msra.mxu0 0.0
    %597 = vmatprep.subr.mxu0 0.0
    %598 = vmatpush1.msra.mxu0 0.0
    %599 = vmatprep.subr.mxu0 0.0
    %600 = vmatpush1.msra.mxu0 0.0
    %601 = vmatprep.subr.mxu0 0.0
    %602 = vmatpush1.msra.mxu0 0.0
    %603 = vmatprep.subr.mxu0 0.0
    %604 = vmatpush1.msra.mxu0 0.0
    %605 = vmatprep.subr.mxu0 0.0
    %606 = vmatpush1.msra.mxu0 0.0
    %607 = vmatprep.subr.mxu0 0.0
    %608 = vmatpush1.msra.mxu0 0.0
    %609 = vmatprep.subr.mxu0 0.0
    %610 = vmatpush1.msra.mxu0 0.0
    %611 = vmatprep.subr.mxu0 0.0
    %612 = vmatpush1.msra.mxu0 0.0
    %613 = vmatprep.subr.mxu0 0.0
    %614 = vmatpush1.msra.mxu0 0.0
    %615 = vmatprep.subr.mxu0 0.0
    %616 = vmatpush1.msra.mxu0 0.0
    %617 = vmatprep.subr.mxu0 0.0
    %618 = vmatpush1.msra.mxu0 0.0
    %619 = vmatprep.subr.mxu0 0.0
    %620 = vmatpush1.msra.mxu0 0.0
    %621 = vmatprep.subr.mxu0 0.0
    %622 = vmatpush1.msra.mxu0 0.0
    %623 = vmatprep.subr.mxu0 0.0
    %624 = vmatpush1.msra.mxu0 0.0
    %625 = vmatprep.mubr.f32.mxu0 0.0
    %626 = vmatmul.mubr.f32.gmra.mrb[0].mxu0 %v538
    %v627 = vpop.f32.mrb[0].mxu0
    %v628 = vadd.f32 0.0, %v627
    %v629 = vpop.f32.mrb[0].mxu0
    %630 = vmatprep.mubr.f32.mxu0 0.0
    %631 = vmatmul.mubr.f32.gmra.mrb[0].mxu0 %v541
    %v632 = vpop.f32.mrb[0].mxu0
    %v633 = vadd.f32 0.0, %v632
    %v634 = vpop.f32.mrb[0].mxu0
    %635 = vmatprep.mubr.f32.mxu0 0.0
    %636 = vmatmul.mubr.f32.gmra.mrb[0].mxu0 %v544
    %v637 = vpop.f32.mrb[0].mxu0
    %v638 = vadd.f32 0.0, %v637
    %v639 = vpop.f32.mrb[0].mxu0
    %640 = vmatprep.mubr.f32.mxu0 0.0
    %641 = vmatmul.mubr.f32.gmra.mrb[0].mxu0 %v547
    %v642 = vpop.f32.mrb[0].mxu0
    %v643 = vadd.f32 0.0, %v642
    %v644 = vpop.f32.mrb[0].mxu0
    %645 = vmatprep.mubr.f32.mxu0 0.0
    %646 = vmatmul.mubr.f32.gmra.mrb[0].mxu0 %v550
    %v647 = vpop.f32.mrb[0].mxu0
    %v648 = vadd.f32 0.0, %v647
    %v649 = vpop.f32.mrb[0].mxu0
    %650 = vmatprep.mubr.f32.mxu0 0.0
    %651 = vmatmul.mubr.f32.gmra.mrb[0].mxu0 %v553
    %v652 = vpop.f32.mrb[0].mxu0
    %v653 = vadd.f32 0.0, %v652
    %v654 = vpop.f32.mrb[0].mxu0
    %655 = vmatprep.mubr.f32.mxu0 0.0
    %656 = vmatmul.mubr.f32.gmra.mrb[0].mxu0 %v556
    %v657 = vpop.f32.mrb[0].mxu0
    %v658 = vadd.f32 0.0, %v657
    %v659 = vpop.f32.mrb[0].mxu0
    %660 = vmatprep.mubr.f32.mxu0 0.0
    %661 = vmatmul.mubr.f32.gmra.mrb[0].mxu0 %v559
    %v662 = vpop.f32.mrb[0].mxu0
    %v663 = vadd.f32 0.0, %v662
    %v664 = vpop.f32.mrb[0].mxu0
    %665 = vdwg.mxu0
    %v666 = vmul.f32 %v491, 0.015625
    %v667 = vmul.f32 %v496, 0.015625
    %v668 = vmul.f32 %v501, 0.015625
    %v669 = vmul.f32 %v506, 0.015625
    %v670 = vmul.f32 %v511, 0.015625
    %v671 = vmul.f32 %v516, 0.015625
    %v672 = vmul.f32 %v521, 0.015625
    %v673 = vmul.f32 %v526, 0.015625
    %v674 = vmul.f32 %v628, 0.015625
    %v675 = vmul.f32 %v633, 0.015625
    %v676 = vmul.f32 %v638, 0.015625
    %v677 = vmul.f32 %v643, 0.015625
    %v678 = vmul.f32 %v648, 0.015625
    %v679 = vmul.f32 %v653, 0.015625
    %v680 = vmul.f32 %v658, 0.015625
    %v681 = vmul.f32 %v663, 0.015625
    %v682 = vmul.f32 %v666, %v666
    %v683 = vmul.f32 %v667, %v667
    %v684 = vmul.f32 %v668, %v668
    %v685 = vmul.f32 %v669, %v669
    %v686 = vmul.f32 %v670, %v670
    %v687 = vmul.f32 %v671, %v671
    %v688 = vmul.f32 %v672, %v672
    %v689 = vmul.f32 %v673, %v673
    %v690 = vsub.f32 %v674, %v682
    %v691 = vsub.f32 %v675, %v683
    %v692 = vsub.f32 %v676, %v684
    %v693 = vsub.f32 %v677, %v685
    %v694 = vsub.f32 %v678, %v686
    %v695 = vsub.f32 %v679, %v687
    %v696 = vsub.f32 %v680, %v688
    %v697 = vsub.f32 %v681, %v689
    %v698 = vadd.f32 %v690, 1e-05
    %v699 = vadd.f32 %v691, 1e-05
    %v700 = vadd.f32 %v692, 1e-05
    %v701 = vadd.f32 %v693, 1e-05
    %v702 = vadd.f32 %v694, 1e-05
    %v703 = vadd.f32 %v695, 1e-05
    %v704 = vadd.f32 %v696, 1e-05
    %v705 = vadd.f32 %v697, 1e-05
    %v706 = vrsqrt.pop %v698
    %v707 = vrsqrt.pop %v699
    %v708 = vrsqrt.pop %v700
    %v709 = vrsqrt.pop %v701
    %v710 = vrsqrt.pop %v702
    %v711 = vrsqrt.pop %v703
    %v712 = vrsqrt.pop %v704
    %v713 = vrsqrt.pop %v705
    %715 = vset.pattern.permute.xlu0 0
    %716 = vperm.xlu0 %715, %v666
    %v717 = vpop.permute.xlu0 %716
    %720 = vset.pattern.permute.xlu0 0
    %721 = vperm.xlu0 %720, %v667
    %v722 = vpop.permute.xlu0 %721
    %725 = vset.pattern.permute.xlu0 0
    %726 = vperm.xlu0 %725, %v668
    %v727 = vpop.permute.xlu0 %726
    %730 = vset.pattern.permute.xlu0 0
    %731 = vperm.xlu0 %730, %v669
    %v732 = vpop.permute.xlu0 %731
    %735 = vset.pattern.permute.xlu0 0
    %736 = vperm.xlu0 %735, %v670
    %v737 = vpop.permute.xlu0 %736
    %740 = vset.pattern.permute.xlu0 0
    %741 = vperm.xlu0 %740, %v671
    %v742 = vpop.permute.xlu0 %741
    %745 = vset.pattern.permute.xlu0 0
    %746 = vperm.xlu0 %745, %v672
    %v747 = vpop.permute.xlu0 %746
    %750 = vset.pattern.permute.xlu0 0
    %751 = vperm.xlu0 %750, %v673
    %v752 = vpop.permute.xlu0 %751
    %v754 = vsub.f32 %v362, %v717
    %v755 = vsub.f32 %v367, %v722
    %v756 = vsub.f32 %v372, %v727
    %v757 = vsub.f32 %v377, %v732
    %v758 = vsub.f32 %v382, %v737
    %v759 = vsub.f32 %v387, %v742
    %v760 = vsub.f32 %v392, %v747
    %v761 = vsub.f32 %v397, %v752
    %763 = vset.pattern.permute.xlu0 0
    %764 = vperm.xlu0 %763, %v706
    %v765 = vpop.permute.xlu0 %764
    %768 = vset.pattern.permute.xlu0 0
    %769 = vperm.xlu0 %768, %v707
    %v770 = vpop.permute.xlu0 %769
    %773 = vset.pattern.permute.xlu0 0
    %774 = vperm.xlu0 %773, %v708
    %v775 = vpop.permute.xlu0 %774
    %778 = vset.pattern.permute.xlu0 0
    %779 = vperm.xlu0 %778, %v709
    %v780 = vpop.permute.xlu0 %779
    %783 = vset.pattern.permute.xlu0 0
    %784 = vperm.xlu0 %783, %v710
    %v785 = vpop.permute.xlu0 %784
    %788 = vset.pattern.permute.xlu0 0
    %789 = vperm.xlu0 %788, %v711
    %v790 = vpop.permute.xlu0 %789
    %793 = vset.pattern.permute.xlu0 0
    %794 = vperm.xlu0 %793, %v712
    %v795 = vpop.permute.xlu0 %794
    %798 = vset.pattern.permute.xlu0 0
    %799 = vperm.xlu0 %798, %v713
    %v800 = vpop.permute.xlu0 %799
    %v802 = vmul.f32 %v754, %v765
    %v803 = vmul.f32 %v755, %v770
    %v804 = vmul.f32 %v756, %v775
    %v805 = vmul.f32 %v757, %v780
    %v806 = vmul.f32 %v758, %v785
    %v807 = vmul.f32 %v759, %v790
    %v808 = vmul.f32 %v760, %v795
    %v809 = vmul.f32 %v761, %v800
    %v810 = vsel %vm165, %v802, 0.0
    %v811 = vrot.slane %v810, 4
    %v812 = vadd.f32 %v810, %v811
    %v813 = vrot.slane %v812, 2
    %v814 = vadd.f32 %v812, %v813
    %v815 = vrot.slane %v814, 1
    %v816 = vadd.f32 %v814, %v815
    %v817 = vsel %vm165, %v803, 0.0
    %v818 = vrot.slane %v817, 4
    %v819 = vadd.f32 %v817, %v818
    %v820 = vrot.slane %v819, 2
    %v821 = vadd.f32 %v819, %v820
    %v822 = vrot.slane %v821, 1
    %v823 = vadd.f32 %v821, %v822
    %v824 = vsel %vm165, %v804, 0.0
    %v825 = vrot.slane %v824, 4
    %v826 = vadd.f32 %v824, %v825
    %v827 = vrot.slane %v826, 2
    %v828 = vadd.f32 %v826, %v827
    %v829 = vrot.slane %v828, 1
    %v830 = vadd.f32 %v828, %v829
    %v831 = vsel %vm165, %v805, 0.0
    %v832 = vrot.slane %v831, 4
    %v833 = vadd.f32 %v831, %v832
    %v834 = vrot.slane %v833, 2
    %v835 = vadd.f32 %v833, %v834
    %v836 = vrot.slane %v835, 1
    %v837 = vadd.f32 %v835, %v836
    %v838 = vsel %vm165, %v806, 0.0
    %v839 = vrot.slane %v838, 4
    %v840 = vadd.f32 %v838, %v839
    %v841 = vrot.slane %v840, 2
    %v842 = vadd.f32 %v840, %v841
    %v843 = vrot.slane %v842, 1
    %v844 = vadd.f32 %v842, %v843
    %v845 = vsel %vm165, %v807, 0.0
    %v846 = vrot.slane %v845, 4
    %v847 = vadd.f32 %v845, %v846
    %v848 = vrot.slane %v847, 2
    %v849 = vadd.f32 %v847, %v848
    %v850 = vrot.slane %v849, 1
    %v851 = vadd.f32 %v849, %v850
    %v852 = vsel %vm165, %v808, 0.0
    %v853 = vrot.slane %v852, 4
    %v854 = vadd.f32 %v852, %v853
    %v855 = vrot.slane %v854, 2
    %v856 = vadd.f32 %v854, %v855
    %v857 = vrot.slane %v856, 1
    %v858 = vadd.f32 %v856, %v857
    %v859 = vsel %vm165, %v809, 0.0
    %v860 = vrot.slane %v859, 4
    %v861 = vadd.f32 %v859, %v860
    %v862 = vrot.slane %v861, 2
    %v863 = vadd.f32 %v861, %v862
    %v864 = vrot.slane %v863, 1
    %v865 = vadd.f32 %v863, %v864
    %v866 = vld [vmem:[%s4] sm:$0xff]
    %v867 = vld [vmem:[%s4 + $0x8] sm:$0xff]
    %v868 = vld [vmem:[%s4 + $0x10] sm:$0xff]
    %v869 = vld [vmem:[%s4 + $0x18] sm:$0xff]
    %v870 = vld [vmem:[%s4 + $0x20] sm:$0xff]
    %v871 = vld [vmem:[%s4 + $0x28] sm:$0xff]
    %v872 = vld [vmem:[%s4 + $0x30] sm:$0xff]
    %v873 = vld [vmem:[%s4 + $0x38] sm:$0xff]
    %v874 = vld [vmem:[%s5] sm:$0x1]
    %v875 = vmul.f32 %v874, 8.0
    %v877 = vlaneseq
    %v878 = vshrl.u32 %v877, 7
    %v879 = vsub.s32 0, %v878
    %v880 = vrot.slane %v875, %v879
    %vm890 = vcmask 1041409
    %v891 = vsel %vm890, %v823, %v816
    %vm892 = vcmask 1042434
    %v893 = vsel %vm892, %v830, %v891
    %vm894 = vcmask 1043459
    %v895 = vsel %vm894, %v837, %v893
    %vm896 = vcmask 1044484
    %v897 = vsel %vm896, %v844, %v895
    %vm898 = vcmask 1045509
    %v899 = vsel %vm898, %v851, %v897
    %vm900 = vcmask 1046534
    %v901 = vsel %vm900, %v858, %v899
    %vm902 = vcmask 1047559
    %v903 = vsel %vm902, %v865, %v901
    %v904 = vsel %vm165, %v903, 0
    %906 = vmatprep.subr.mxu0 0.0
    %907 = vmatpush1.msra.mxu0 %v866
    %908 = vmatprep.subr.mxu0 0.0
    %909 = vmatpush1.msra.mxu0 %v867
    %910 = vmatprep.subr.mxu0 0.0
    %911 = vmatpush1.msra.mxu0 %v868
    %912 = vmatprep.subr.mxu0 0.0
    %913 = vmatpush1.msra.mxu0 %v869
    %914 = vmatprep.subr.mxu0 0.0
    %915 = vmatpush1.msra.mxu0 %v870
    %916 = vmatprep.subr.mxu0 0.0
    %917 = vmatpush1.msra.mxu0 %v871
    %918 = vmatprep.subr.mxu0 0.0
    %919 = vmatpush1.msra.mxu0 %v872
    %920 = vmatprep.subr.mxu0 0.0
    %921 = vmatpush1.msra.mxu0 %v873
    %922 = vmatprep.subr.mxu0 0.0
    %923 = vmatpush1.msra.mxu0 0.0
    %924 = vmatprep.subr.mxu0 0.0
    %925 = vmatpush1.msra.mxu0 0.0
    %926 = vmatprep.subr.mxu0 0.0
    %927 = vmatpush1.msra.mxu0 0.0
    %928 = vmatprep.subr.mxu0 0.0
    %929 = vmatpush1.msra.mxu0 0.0
    %930 = vmatprep.subr.mxu0 0.0
    %931 = vmatpush1.msra.mxu0 0.0
    %932 = vmatprep.subr.mxu0 0.0
    %933 = vmatpush1.msra.mxu0 0.0
    %934 = vmatprep.subr.mxu0 0.0
    %935 = vmatpush1.msra.mxu0 0.0
    %936 = vmatprep.subr.mxu0 0.0
    %937 = vmatpush1.msra.mxu0 0.0
    %938 = vmatprep.subr.mxu0 0.0
    %939 = vmatpush1.msra.mxu0 0.0
    %940 = vmatprep.subr.mxu0 0.0
    %941 = vmatpush1.msra.mxu0 0.0
    %942 = vmatprep.subr.mxu0 0.0
    %943 = vmatpush1.msra.mxu0 0.0
    %944 = vmatprep.subr.mxu0 0.0
    %945 = vmatpush1.msra.mxu0 0.0
    %946 = vmatprep.subr.mxu0 0.0
    %947 = vmatpush1.msra.mxu0 0.0
    %948 = vmatprep.subr.mxu0 0.0
    %949 = vmatpush1.msra.mxu0 0.0
    %950 = vmatprep.subr.mxu0 0.0
    %951 = vmatpush1.msra.mxu0 0.0
    %952 = vmatprep.subr.mxu0 0.0
    %953 = vmatpush1.msra.mxu0 0.0
    %954 = vmatprep.subr.mxu0 0.0
    %955 = vmatpush1.msra.mxu0 0.0
    %956 = vmatprep.subr.mxu0 0.0
    %957 = vmatpush1.msra.mxu0 0.0
    %958 = vmatprep.subr.mxu0 0.0
    %959 = vmatpush1.msra.mxu0 0.0
    %960 = vmatprep.subr.mxu0 0.0
    %961 = vmatpush1.msra.mxu0 0.0
    %962 = vmatprep.subr.mxu0 0.0
    %963 = vmatpush1.msra.mxu0 0.0
    %964 = vmatprep.subr.mxu0 0.0
    %965 = vmatpush1.msra.mxu0 0.0
    %966 = vmatprep.subr.mxu0 0.0
    %967 = vmatpush1.msra.mxu0 0.0
    %968 = vmatprep.subr.mxu0 0.0
    %969 = vmatpush1.msra.mxu0 0.0
    %970 = vmatprep.mubr.f32.mxu0 0.0
    %971 = vmatmul.mubr.f32.gmra.mrb[0].mxu0 %v904
    %v972 = vpop.f32.mrb[0].mxu0
    %v973 = vadd.f32 %v880, %v972
    %v974 = vpop.f32.mrb[0].mxu0
    %975 = vdwg.mxu0
    %v976 = vld [vmem:[%s6] sm:$0xff]
    %978 = vset.pattern.permute.xlu0 0
    %979 = vperm.xlu0 %978, %v976
    %v980 = vpop.permute.xlu0 %979
    %v982 = vmul.f32 %v973, %v980
    %983 = vst [vmem:[#allocation2] sm:$0xff] %v982
    // Predicated region
    $region30: #{tpu_custom_call.1} parent=1 // pred_check
      _
    $region31: #{tpu_custom_call.1} parent=1 // pred_check_branch
      %985 = sbr.rel (0) target = $region33
    $region32: #{tpu_custom_call.1} parent=1 // pred_region
      %s987 = ssub.s32 128, 128
      %988 = vsyncadd [#allocation3], %s987
      %s990 = sshll.u32 [#allocation2], 4
      %s991 = int_to_ptr.vmem [resolvable:$true] %s990
      %993 = dma.vmem_to_hbm [thread:$0]  %s991, 128, %s7, [#allocation3]
    $region33: #{tpu_custom_call.1} parent=1 // pred_fallthru
      _
    // Predicated region
    $region34: #{tpu_custom_call.1} parent=1 // pred_check
      _
    $region35: #{tpu_custom_call.1} parent=1 // pred_check_branch
      %995 = sbr.rel (0) target = $region37
    $region36: #{tpu_custom_call.1} parent=1 // pred_region
      %996 = dma.done [#allocation3], 128
    $region37: #{tpu_custom_call.1} parent=1 // pred_fallthru
      _
    %997 = vsyncpa [#allocation3], 1

</llo_original>
